<compile_context>
chip_gen: v7x
topology: tpu7x:2x2x1
jax: 0.10.0
libtpu: 0.0.40
codegen_flags: <defaults>
</compile_context>

<pallas_src>
import functools

import jax
import jax.numpy as jnp
from jax import lax
from jax.experimental import pallas as pl
from jax.experimental.pallas import tpu as pltpu


def _round_up(x, m):
    return (x + m - 1) // m * m


def _choose_spatial_tile(s_total, c_pad, itemsize, spatial_tile=None,
                         target_step_bytes=2 << 20):
    """Rows of H*W processed per grid step.

    Sized so each step DMAs ~target_step_bytes of x (>= 1 MiB keeps the fixed
    ~0.35us/step overhead hidden on v6e; raise to ~2.5 MiB on v7x), collapsed
    to a single step when S fits, and balanced so n_tiles * TS ~= S.
    """
    SUBLANE = 8
    if spatial_tile is None:
        spatial_tile = max(target_step_bytes // (c_pad * itemsize), 4 * SUBLANE)
    spatial_tile = max(min(spatial_tile, s_total), 1)
    n_tiles = -(-s_total // spatial_tile)
    ts = _round_up(-(-s_total // n_tiles), SUBLANE)      # balanced tiles
    n_tiles = -(-s_total // ts)
    return ts, n_tiles


def _netvlad_kernel(x_ref, w_ref, cent_ref, out_ref, vlad_acc, asum_acc, *,
                    num_clusters, num_channels, k_pad, spatial_size,
                    spatial_tile, fold_asum):
    # x_ref    : (1, TS, C_pad)   spatial tile of one image, channels on lanes
    # w_ref    : (K_pad, C_pad)   1x1 conv weight (zero padded, no bias)
    # cent_ref : (K_pad, C_pad)   cluster centroids (zero padded)
    # out_ref  : (1, K, C)        normalized VLAD (unpadded)
    # vlad_acc : (K_pad, C_pad) f32 ; asum_acc : (K_pad, 1) f32 (non-fold path)
    s = pl.program_id(1)

    @pl.when(s == 0)
    def _init():
        vlad_acc[...] = jnp.zeros_like(vlad_acc)
        if not fold_asum:
            asum_acc[...] = jnp.zeros_like(asum_acc)

    x = x_ref[0]                                              # (TS, C_pad)

    # logits^T = w . x^T : (K_pad, TS).  Standard-LHS / transposed-RHS matmul
    # (the flash-attention q.k^T pattern) -> no operand transpose needed.
    logits = lax.dot_general(w_ref[...], x, (((1,), (1,)), ((), ())),
                             preferred_element_type=jnp.float32)
    if k_pad != num_clusters:                                 # mask padded clusters
        k_idx = lax.broadcasted_iota(jnp.int32, logits.shape, 0)
        logits = jnp.where(k_idx < num_clusters, logits, -jnp.inf)

    # softmax over clusters (torch: softmax(dim=1) of the (N, K, S) view).
    # Exact divide: the kernel is DMA/overhead bound, the EUP has slack.
    m = jnp.max(logits, axis=0, keepdims=True)                # (1, TS)
    e = jnp.exp(logits - m)
    a = e / jnp.sum(e, axis=0, keepdims=True)                 # (K_pad, TS)

    if not fold_asum:
        if spatial_size % spatial_tile != 0:                  # ragged last tile
            col = lax.broadcasted_iota(jnp.int32, a.shape, 1) + s * spatial_tile
            a = jnp.where(col < spatial_size, a, 0.0)
        asum_acc[...] += jnp.sum(a, axis=1, keepdims=True)    # (K_pad, 1)
    # fold_asum: padded spatial rows of x are all-zero (including the ones
    # column), so padded pixels contribute nothing and no ragged mask is needed
    # -- a_sum accumulates in vlad_acc[:, num_channels].

    # vlad partial sum: (K_pad, TS) @ (TS, C_pad) -- canonical MXU matmul.
    # (a is cast to x's dtype; for bf16 inputs this is one extra quantization
    # of the assignment weights vs a pure-f32 reference.)
    vlad_acc[...] += jnp.dot(a.astype(x.dtype), x,
                             preferred_element_type=jnp.float32)

    @pl.when(s == pl.num_programs(1) - 1)
    def _finalize():
        eps = jnp.float32(1e-12)
        cent = cent_ref[...].astype(jnp.float32)
        vlad = vlad_acc[...]
        if fold_asum:
            a_sum = vlad[:, num_channels:num_channels + 1]    # (K_pad, 1)
        else:
            a_sum = asum_acc[...]
        vlad = vlad - cent * a_sum
        vlad = vlad[:num_clusters, :num_channels]    # drop padding (+ ones col)
        # intra-normalization: L2 over channels per cluster (F.normalize dim=2)
        sq_c = jnp.sum(vlad * vlad, axis=-1, keepdims=True)
        vlad = vlad * lax.rsqrt(jnp.maximum(sq_c, eps * eps))
        # global L2 over the flattened descriptor (F.normalize dim=1)
        sq_g = jnp.sum(vlad * vlad)
        vlad = vlad * lax.rsqrt(jnp.maximum(sq_g, eps * eps))
        out_ref[0] = vlad.astype(out_ref.dtype)


def netvlad_forward(x_nchw, conv_w, centroids, *, spatial_tile=None,
                    target_step_bytes=2 << 20, vmem_limit_bytes=None):
    """x_nchw: (N, C, H, W); conv_w: (K, C) or (K, C, 1, 1); centroids: (K, C).

    Returns (N, K*C), matching NetVLAD.forward.
    """
    N, C, H, W = x_nchw.shape
    if conv_w.ndim == 4:
        conv_w = conv_w[:, :, 0, 0]
    K = conv_w.shape[0]
    S = H * W

    LANE, SUBLANE = 128, 8
    C_pad = _round_up(C, LANE)
    K_pad = _round_up(K, SUBLANE)        # clusters live on the sublane axis

    TS, n_s_tiles = _choose_spatial_tile(
        S, C_pad, x_nchw.dtype.itemsize, spatial_tile, target_step_bytes)
    S_pad = n_s_tiles * TS
    fold_asum = C_pad > C                # room for a ones column -> fold a_sum

    # NCHW -> (N, S, C) + zero pad.  allow_input_fusion below lets XLA fuse
    # this transpose/pad into the pallas_call input read.
    x_nsc = jnp.transpose(x_nchw.reshape(N, C, S), (0, 2, 1))
    if fold_asum:
        # ones column at channel index C: vlad_acc[:, C] accumulates a_sum.
        # Spatial padding rows stay exactly zero (added by jnp.pad below).
        x_nsc = jnp.concatenate(
            [x_nsc, jnp.ones((N, S, 1), x_nsc.dtype)], axis=-1)
    pad_c = C_pad - x_nsc.shape[-1]
    pad_s = S_pad - S
    if pad_c or pad_s:
        x_nsc = jnp.pad(x_nsc, ((0, 0), (0, pad_s), (0, pad_c)))
    w_kc = jnp.pad(conv_w, ((0, K_pad - K), (0, C_pad - C)))
    cent = jnp.pad(centroids, ((0, K_pad - K), (0, C_pad - C)))

    # Derive vmem_limit_bytes from the actual footprint when it would exceed
    # the smallest (v5e, 16 MiB) scoped-VMEM default.
    in_item = x_nsc.dtype.itemsize
    out_item = jnp.dtype(x_nchw.dtype).itemsize
    vmem_est = (2 * TS * C_pad * in_item            # x stream (double-buffered)
                + 4 * K_pad * C_pad * in_item       # weight + centroids
                + 2 * K * C * out_item              # output block
                + K_pad * C_pad * 4 + K_pad * 4     # f32 accumulators
                + (2 << 20))                        # compiler slack
    if vmem_limit_bytes is None and vmem_est > (16 << 20):
        vmem_limit_bytes = int(min(_round_up(vmem_est + (8 << 20), 1 << 20),
                                   64 << 20))

    kernel = functools.partial(
        _netvlad_kernel, num_clusters=K, num_channels=C, k_pad=K_pad,
        spatial_size=S, spatial_tile=TS, fold_asum=fold_asum)

    # TODO(synk): on v7x with N < 2 one TensorCore stays idle; a core split of
    # the spatial axis (partial vlad per core + tiny combine) would recover it.
    out = pl.pallas_call(
        kernel,
        out_shape=jax.ShapeDtypeStruct((N, K, C), x_nchw.dtype),
        grid_spec=pltpu.PrefetchScalarGridSpec(
            num_scalar_prefetch=0,
            grid=(N, n_s_tiles),
            in_specs=[
                pl.BlockSpec((1, TS, C_pad), lambda n, s: (n, s, 0)),
                pl.BlockSpec((K_pad, C_pad), lambda n, s: (0, 0)),
                pl.BlockSpec((K_pad, C_pad), lambda n, s: (0, 0)),
            ],
            out_specs=pl.BlockSpec((1, K, C), lambda n, s: (n, 0, 0)),
            scratch_shapes=[
                pltpu.VMEM((K_pad, C_pad), jnp.float32),   # vlad accumulator
                pltpu.VMEM((K_pad, 1), jnp.float32),       # a_sum (non-fold)
            ],
        ),
        compiler_params=pltpu.CompilerParams(
            dimension_semantics=("parallel", "arbitrary"),
            # TODO(synk): verify (HLO/xprof) the NCHW->NSC transpose+pad really
            # fuses into the pallas_call read; if not, accept NHWC from the
            # producer to avoid an extra HBM pass over x.
            allow_input_fusion=[True, False, False],
            vmem_limit_bytes=vmem_limit_bytes,
        ),
    )(x_nsc, w_kc, cent)

    # row-major (K, C) flatten matches torch's vlad.view(N, -1)
    return out.reshape(N, K * C)


def _netvlad_reference(x_nchw, conv_w, centroids):
    """Plain-JAX reference mirroring the torch forward, for validation."""
    N, C, H, W = x_nchw.shape
    x_flat = x_nchw.reshape(N, C, H * W)                               # (N, C, S)
    logits = jnp.einsum("kc,ncs->nks", conv_w, x_flat)                 # (N, K, S)
    a = jax.nn.softmax(logits, axis=1)                                 # over K
    vlad = jnp.einsum("nks,ncs->nkc", a, x_flat) \
        - centroids[None, :, :] * jnp.sum(a, axis=-1)[:, :, None]
    eps = 1e-12
    vlad = vlad / jnp.maximum(jnp.linalg.norm(vlad, axis=2, keepdims=True), eps)
    vlad = vlad.reshape(N, -1)
    vlad = vlad / jnp.maximum(jnp.linalg.norm(vlad, axis=1, keepdims=True), eps)
    return vlad


if __name__ == "__main__":
    key = jax.random.PRNGKey(0)

    # ---- Case 1: C < 128 (a_sum folded into the vlad matmul), S = 256 -------
    N, C, H, W, K = 2, 32, 16, 16, 8
    k1, k2, k3, key = jax.random.split(key, 4)
    x = jax.random.normal(k1, (N, C, H, W), dtype=jnp.float32)
    conv_w = jax.random.normal(k2, (K, C), dtype=jnp.float32) * 0.1
    centroids = jax.random.uniform(k3, (K, C), dtype=jnp.float32)
    # TODO(synk): self.wq / self.wk / normalize_input exist in __init__ but are
    # unused in forward(), so they have no kernel equivalent here.

    ref = _netvlad_reference(x, conv_w, centroids)
    out = netvlad_forward(x, conv_w, centroids)                # auto: 1 S tile
    out_tiled = netvlad_forward(x, conv_w, centroids,
                                spatial_tile=64)               # 4 accumulation steps
    jax.block_until_ready((out, out_tiled))
    assert out.shape == (N, K * C), out.shape
    assert jnp.allclose(out, ref, atol=1e-4, rtol=1e-4), (
        float(jnp.max(jnp.abs(out - ref))))
    assert jnp.allclose(out_tiled, ref, atol=1e-4, rtol=1e-4), (
        float(jnp.max(jnp.abs(out_tiled - ref))))

    # ---- Case 2: C == 128 (separate a_sum scratch) + ragged spatial tile ----
    N2, C2, H2, W2, K2 = 2, 128, 5, 5, 16
    k1, k2, k3, key = jax.random.split(key, 4)
    x2 = jax.random.normal(k1, (N2, C2, H2, W2), dtype=jnp.float32)
    conv_w2 = jax.random.normal(k2, (K2, C2), dtype=jnp.float32) * 0.1
    centroids2 = jax.random.uniform(k3, (K2, C2), dtype=jnp.float32)

    ref2 = _netvlad_reference(x2, conv_w2, centroids2)
    out2 = netvlad_forward(x2, conv_w2[:, :, None, None], centroids2)
    jax.block_until_ready(out2)
    assert out2.shape == (N2, K2 * C2), out2.shape
    assert jnp.allclose(out2, ref2, atol=1e-4, rtol=1e-4), (
        float(jnp.max(jnp.abs(out2 - ref2))))

    print("KERNEL_OK")
</pallas_src>

<mosaic_0001>
module attributes {stable_mosaic.version = 11 : i64} {
  func.func @_netvlad_kernel(%arg0: i32, %arg1: i32, %arg2: memref<1x256x128xf32, #tpu.memory_space<vmem>>, %arg3: memref<8x128xf32, #tpu.memory_space<vmem>>, %arg4: memref<8x128xf32, #tpu.memory_space<vmem>>, %arg5: memref<1x8x32xf32, #tpu.memory_space<vmem>>, %arg6: memref<8x128xf32, #tpu.memory_space<vmem>>, %arg7: memref<8x1xf32, #tpu.memory_space<vmem>>) attributes {dimension_semantics = [#tpu.dimension_semantics<parallel>, #tpu.dimension_semantics<arbitrary>], iteration_bounds = array<i64: 2, 1>, scalar_prefetch = 0 : i64, scratch_operands = 2 : i64, tpu.core_type = #tpu.core_type<tc>, window_params = [{transform_indices = @transform_0, window_bounds = array<i64: 1, 256, 128>}, {pipeline_mode = #tpu.pipeline_mode<synchronous>, transform_indices = @transform_1, window_bounds = array<i64: 8, 128>}, {pipeline_mode = #tpu.pipeline_mode<synchronous>, transform_indices = @transform_2, window_bounds = array<i64: 8, 128>}, {transform_indices = @transform_3, window_bounds = array<i64: 1, 8, 32>}]} {
    %c0_i32 = arith.constant 0 : i32
    %0 = arith.cmpi eq, %arg1, %c0_i32 : i32
    %1 = arith.extui %0 : i1 to i32
    %c0_i32_0 = arith.constant 0 : i32
    %2 = arith.cmpi ne, %1, %c0_i32_0 : i32
    scf.if %2 {
      %cst_14 = arith.constant 0.000000e+00 : f32
      %23 = vector.broadcast %cst_14 : f32 to vector<8x128xf32>
      %c0_15 = arith.constant 0 : index
      %c0_16 = arith.constant 0 : index
      %24 = vector.load %arg6[%c0_15, %c0_16] : memref<8x128xf32, #tpu.memory_space<vmem>>, vector<8x128xf32>
      tpu.vector_store %arg6[%c0_15, %c0_16], %23 {strides = array<i32>} : memref<8x128xf32, #tpu.memory_space<vmem>>, vector<8x128xf32>,
    } else {
    }
    %c0 = arith.constant 0 : index
    %c0_1 = arith.constant 0 : index
    %c0_2 = arith.constant 0 : index
    %3 = vector.load %arg2[%c0, %c0_1, %c0_2] : memref<1x256x128xf32, #tpu.memory_space<vmem>>, vector<1x256x128xf32>
    %4 = vector.shape_cast %3 : vector<1x256x128xf32> to vector<256x128xf32>
    %c0_3 = arith.constant 0 : index
    %c0_4 = arith.constant 0 : index
    %5 = vector.load %arg3[%c0_3, %c0_4] : memref<8x128xf32, #tpu.memory_space<vmem>>, vector<8x128xf32>
    %cst = arith.constant dense<0.000000e+00> : vector<8x256xf32>
    %6 = tpu.matmul %5, %4, %cst {dimension_numbers = #tpu.dot_dimension_numbers<[1], [1], [0], [0], [0, 0, 1, 0], [], []>} : vector<8x128xf32>, vector<256x128xf32>, vector<8x256xf32> -> vector<8x256xf32>
    %cst_5 = arith.constant dense<0xFF800000> : vector<256xf32>
    %7 = vector.multi_reduction <maximumf>, %6, %cst_5 [0] : vector<8x256xf32> to vector<256xf32>
    %8 = vector.shape_cast %7 : vector<256xf32> to vector<1x256xf32>
    %9 = vector.broadcast %8 : vector<1x256xf32> to vector<8x256xf32>
    %10 = arith.subf %6, %9 : vector<8x256xf32>
    %11 = math.exp %10 : vector<8x256xf32>
    %cst_6 = arith.constant dense<0.000000e+00> : vector<256xf32>
    %12 = vector.multi_reduction <add>, %11, %cst_6 [0] : vector<8x256xf32> to vector<256xf32>
    %13 = vector.shape_cast %12 : vector<256xf32> to vector<1x256xf32>
    %14 = vector.broadcast %13 : vector<1x256xf32> to vector<8x256xf32>
    %15 = arith.divf %11, %14 : vector<8x256xf32>
    %c0_7 = arith.constant 0 : index
    %c0_8 = arith.constant 0 : index
    %16 = vector.load %arg6[%c0_7, %c0_8] : memref<8x128xf32, #tpu.memory_space<vmem>>, vector<8x128xf32>
    %cst_9 = arith.constant dense<0.000000e+00> : vector<8x128xf32>
    %17 = tpu.matmul %15, %4, %cst_9 {dimension_numbers = #tpu.dot_dimension_numbers<[1], [0], [0], [1], [0, 0, 1, 1], [], []>} : vector<8x256xf32>, vector<256x128xf32>, vector<8x128xf32> -> vector<8x128xf32>
    %18 = arith.addf %16, %17 : vector<8x128xf32>
    %c0_10 = arith.constant 0 : index
    %c0_11 = arith.constant 0 : index
    %19 = vector.load %arg6[%c0_10, %c0_11] : memref<8x128xf32, #tpu.memory_space<vmem>>, vector<8x128xf32>
    tpu.vector_store %arg6[%c0_10, %c0_11], %18 {strides = array<i32>} : memref<8x128xf32, #tpu.memory_space<vmem>>, vector<8x128xf32>,
    %c0_i32_12 = arith.constant 0 : i32
    %20 = arith.cmpi eq, %arg1, %c0_i32_12 : i32
    %21 = arith.extui %20 : i1 to i32
    %c0_i32_13 = arith.constant 0 : i32
    %22 = arith.cmpi ne, %21, %c0_i32_13 : i32
    scf.if %22 {
      %c0_14 = arith.constant 0 : index
      %c0_15 = arith.constant 0 : index
      %23 = vector.load %arg4[%c0_14, %c0_15] : memref<8x128xf32, #tpu.memory_space<vmem>>, vector<8x128xf32>
      %c0_16 = arith.constant 0 : index
      %c0_17 = arith.constant 0 : index
      %24 = vector.load %arg6[%c0_16, %c0_17] : memref<8x128xf32, #tpu.memory_space<vmem>>, vector<8x128xf32>
      %25 = vector.extract_strided_slice %24 {offsets = [0, 32], sizes = [8, 1], strides = [1, 1]} : vector<8x128xf32> to vector<8x1xf32>
      %26 = vector.broadcast %25 : vector<8x1xf32> to vector<8x128xf32>
      %27 = arith.mulf %23, %26 : vector<8x128xf32>
      %28 = arith.subf %24, %27 : vector<8x128xf32>
      %29 = vector.extract_strided_slice %28 {offsets = [0, 0], sizes = [8, 32], strides = [1, 1]} : vector<8x128xf32> to vector<8x32xf32>
      %30 = arith.mulf %29, %29 : vector<8x32xf32>
      %cst_18 = arith.constant dense<0.000000e+00> : vector<8xf32>
      %31 = vector.multi_reduction <add>, %30, %cst_18 [1] : vector<8x32xf32> to vector<8xf32>
      %32 = vector.shape_cast %31 : vector<8xf32> to vector<8x1xf32>
      %cst_19 = arith.constant 9.99999996E-13 : f32
      %cst_20 = arith.constant 9.99999996E-13 : f32
      %33 = arith.mulf %cst_19, %cst_20 : f32
      %34 = vector.broadcast %33 : f32 to vector<8x1xf32>
      %35 = arith.maximumf %32, %34 : vector<8x1xf32>
      %36 = math.rsqrt %35 : vector<8x1xf32>
      %37 = vector.broadcast %36 : vector<8x1xf32> to vector<8x32xf32>
      %38 = arith.mulf %29, %37 : vector<8x32xf32>
      %39 = arith.mulf %38, %38 : vector<8x32xf32>
      %40 = vector.shape_cast %39 : vector<8x32xf32> to vector<1x8x32xf32>
      %cst_21 = arith.constant dense<0.000000e+00> : vector<1xf32>
      %41 = vector.multi_reduction <add>, %40, %cst_21 [1, 2] : vector<1x8x32xf32> to vector<1xf32>
      %42 = vector.shape_cast %41 : vector<1xf32> to vector<1x1x1xf32>
      %43 = vector.extract %42[0, 0, 0] : f32 from vector<1x1x1xf32>
      %cst_22 = arith.constant 9.99999996E-13 : f32
      %cst_23 = arith.constant 9.99999996E-13 : f32
      %44 = arith.mulf %cst_22, %cst_23 : f32
      %45 = arith.maximumf %43, %44 : f32
      %46 = math.rsqrt %45 : f32
      %47 = vector.broadcast %46 : f32 to vector<8x32xf32>
      %48 = arith.mulf %38, %47 : vector<8x32xf32>
      %c0_24 = arith.constant 0 : index
      %c0_25 = arith.constant 0 : index
      %c0_26 = arith.constant 0 : index
      %49 = vector.load %arg5[%c0_24, %c0_25, %c0_26] : memref<1x8x32xf32, #tpu.memory_space<vmem>>, vector<1x8x32xf32>
      %50 = vector.shape_cast %49 : vector<1x8x32xf32> to vector<8x32xf32>
      %51 = vector.shape_cast %48 : vector<8x32xf32> to vector<1x8x32xf32>
      tpu.vector_store %arg5[%c0_24, %c0_25, %c0_26], %51 {strides = array<i32>} : memref<1x8x32xf32, #tpu.memory_space<vmem>>, vector<1x8x32xf32>,
    } else {
    }
    return
  }
  func.func @transform_0(%arg0: i32, %arg1: i32) -> (i32, i32, i32) {
    %c0_i32 = arith.constant 0 : i32
    %c0_i32_0 = arith.constant 0 : i32
    return %arg0, %arg1, %c0_i32 : i32, i32, i32
  }
  func.func @transform_1(%arg0: i32, %arg1: i32) -> (i32, i32) {
    %c0_i32 = arith.constant 0 : i32
    %c0_i32_0 = arith.constant 0 : i32
    %c0_i32_1 = arith.constant 0 : i32
    return %c0_i32, %c0_i32_0 : i32, i32
  }
  func.func @transform_2(%arg0: i32, %arg1: i32) -> (i32, i32) {
    %c0_i32 = arith.constant 0 : i32
    %c0_i32_0 = arith.constant 0 : i32
    %c0_i32_1 = arith.constant 0 : i32
    return %c0_i32, %c0_i32_0 : i32, i32
  }
  func.func @transform_3(%arg0: i32, %arg1: i32) -> (i32, i32, i32) {
    %c0_i32 = arith.constant 0 : i32
    %c0_i32_0 = arith.constant 0 : i32
    %c0_i32_1 = arith.constant 0 : i32
    return %arg0, %c0_i32, %c0_i32_0 : i32, i32, i32
  }
}

</mosaic_0001>

<llo_original>
// kernel: tpu_custom_call.1
$region0: #{tpu_custom_call.1}
  #allocation0 [shape = 'u32[]', space=smem, size = 0x4, offset = 0x4, fixed_abs, tag = 'smem constant byte address 0x4 - core index']
  #allocation1 [shape = 'u32[144,128]{1,0:T(1,128)}', space=vmem, size = 0x12000, scoped, tag = 'internal scratch']
  #allocation2 [shape = 'f32[8,128]{1,0:T(8,128)}', space=vmem, size = 0x1000, scoped, tag = 'scratch operand']
  #allocation3 [shape = 'f32[8,1]{1,0:T(8,128)}', space=vmem, size = 0x1000, scoped, tag = 'scratch operand']
  %s0 = inlined_call_operand.hbm [shape: f32[2,256,128], index: 0, kind: input, shape index: {}]
  %s1 = inlined_call_operand.hbm [shape: f32[8,128], index: 1, kind: input, shape index: {}]
  %s2 = inlined_call_operand.hbm [shape: f32[8,128], index: 2, kind: input, shape index: {}]
  %s3 = inlined_call_operand.hbm [shape: f32[2,8,32], index: 3, kind: output, shape index: {}]
  %s4 = sld [smem:[#allocation0]]
  $region65: #{tpu_custom_call.1} parent=0
    _
  %s6 = ssub.s32 1, %s4
  %s7 = scalar_select 0, %s6, %s4
  $region1: #{tpu_custom_call.1} parent=0
    #allocation4 [shape = 'u8[262144]{0}', space=vmem, size = 0x40000, scoped, tag = 'input window, operand 0']
    #allocation5 [shape = 's32[2]{0}', space=sflag, size = 0x8, scoped, tag = 'scoped memory for tpu_custom_call.1']
    #allocation6 [shape = 's32[2]{0}', space=sflag, size = 0x8, scoped, tag = 'scoped memory for tpu_custom_call.1']
    #allocation7 [shape = 'u8[4096]{0}', space=vmem, size = 0x1000, scoped, tag = 'input window, operand 1, single buffered']
    #allocation8 [shape = 's32[1]{0}', space=sflag, size = 0x4, scoped, tag = 'scoped memory for tpu_custom_call.1']
    #allocation9 [shape = 'u8[4096]{0}', space=vmem, size = 0x1000, scoped, tag = 'input window, operand 2, single buffered']
    #allocation10 [shape = 'u8[8192]{0}', space=vmem, size = 0x2000, scoped, tag = 'output window, operand 0']
    %8 = vsyncpa [#allocation5], 0
    %s9 = scalar_lea.sflag [#allocation5], 1
    %10 = vsyncpa %s9, 0
    %11 = vsyncpa [#allocation8], 0
    %12 = vsyncpa [#allocation6], 0
    %s13 = scalar_lea.sflag [#allocation6], 1
    %14 = vsyncpa %s13, 0
    loop: start=0, step=1, limit=4
    $region2: #{tpu_custom_call.1} parent=1 // loop_pre_header
      _
    $region3: #{tpu_custom_call.1} parent=1 // loop_header
      %s16 = sphi 0, %s20
      %p17 = scmp.ge.s32.totalorder %s16, 4
      %s23 = sphi 0, %s35
      %s24 = sphi 0, %s31
      %s25 = sphi 0, %s23
      %s26 = sphi 0, %s24
      %s27 = sphi 0, %s25
      %s28 = sphi 0, %s26
      %s40 = sphi 0, %s42
      %s43 = sphi 0, %s40
      %s44 = sphi 0, %s43
      %s60 = sphi 0, %s44
      %s64 = sphi 0, %s64
      %s66 = sphi 0, %s64
      %s67 = sphi 0, %s66
      %s81 = sphi 0, %s67
      %s85 = sphi 0, %s85
      %s87 = sphi 0, %s85
      %s88 = sphi 0, %s87
      %s102 = sphi 0, %s88
      %s108 = sphi 0, %s110
      %s111 = sphi 0, %s108
      %s112 = sphi 0, %s111
      %s128 = sphi 0, %s112
    $region4: #{tpu_custom_call.1} parent=1 // loop_header_branch
      %19 = sbr.rel (%p17) target = $region8
    $region5: #{tpu_custom_call.1} parent=1 // loop_body
      %s21 = ssub.s32 %s16, 1
      %s22 = ssub.s32 %s16, 2
      %s29 = sadd.s32 1, %s24
      %p30 = scmp.ge.s32.totalorder %s29, 1
      %s31 = scalar_select %p30, 0, %s29
      %s32 = sadd.s32 1, %s23
      %s33 = scalar_select %p30, %s32, %s23
      %p34 = scmp.ge.s32.totalorder %s33, 2
      %s35 = scalar_select %p34, 0, %s33
      %s36 = ssub.s32 %s23, %s35
      %s37 = ssub.s32 %s24, %s31
      %s38 = sor.u32 %s36, %s37
      %p39 = scmp.eq.s32.totalorder %s38, 0
      %s41 = sadd.s32 %s40, 1
      %s42 = scalar_select %p39, %s40, %s41
      %p45 = pneg %p39
      %p46 = scmp.eq.s32.totalorder %s16, 1
      %p47 = por %p45, %p46
      %p48 = scmp.ne.s32.totalorder %s40, %s43
      %p49 = scmp.eq.s32.totalorder %s16, 0
      %p50 = por %p48, %p49
      %p51 = scmp.ne.s32.totalorder %s40, %s43
      %p52 = scmp.eq.s32.totalorder %s21, 1
      %p53 = por %p51, %p52
      %p54 = scmp.ne.s32.totalorder %s43, %s44
      %p55 = scmp.eq.s32.totalorder %s21, 0
      %p56 = por %p54, %p55
      %p57 = scmp.ne.s32.totalorder %s43, %s44
      %p58 = scmp.eq.s32.totalorder %s22, 1
      %p59 = por %p57, %p58
      %p61 = scmp.ne.s32.totalorder %s44, %s60
      %p62 = scmp.eq.s32.totalorder %s22, 0
      %p63 = por %p61, %p62
      %s65 = sadd.s32 %s64, 1
      %p68 = scmp.eq.s32.totalorder %s16, 1
      %p69 = scmp.ne.s32.totalorder %s64, %s66
      %p70 = scmp.eq.s32.totalorder %s16, 0
      %p71 = por %p69, %p70
      %p72 = scmp.ne.s32.totalorder %s64, %s66
      %p73 = scmp.eq.s32.totalorder %s21, 1
      %p74 = por %p72, %p73
      %p75 = scmp.ne.s32.totalorder %s66, %s67
      %p76 = scmp.eq.s32.totalorder %s21, 0
      %p77 = por %p75, %p76
      %p78 = scmp.ne.s32.totalorder %s66, %s67
      %p79 = scmp.eq.s32.totalorder %s22, 1
      %p80 = por %p78, %p79
      %p82 = scmp.ne.s32.totalorder %s67, %s81
      %p83 = scmp.eq.s32.totalorder %s22, 0
      %p84 = por %p82, %p83
      %s86 = sadd.s32 %s85, 1
      %p89 = scmp.eq.s32.totalorder %s16, 1
      %p90 = scmp.ne.s32.totalorder %s85, %s87
      %p91 = scmp.eq.s32.totalorder %s16, 0
      %p92 = por %p90, %p91
      %p93 = scmp.ne.s32.totalorder %s85, %s87
      %p94 = scmp.eq.s32.totalorder %s21, 1
      %p95 = por %p93, %p94
      %p96 = scmp.ne.s32.totalorder %s87, %s88
      %p97 = scmp.eq.s32.totalorder %s21, 0
      %p98 = por %p96, %p97
      %p99 = scmp.ne.s32.totalorder %s87, %s88
      %p100 = scmp.eq.s32.totalorder %s22, 1
      %p101 = por %p99, %p100
      %p103 = scmp.ne.s32.totalorder %s88, %s102
      %p104 = scmp.eq.s32.totalorder %s22, 0
      %p105 = por %p103, %p104
      %s106 = ssub.s32 %s23, %s35
      %p107 = scmp.eq.s32.totalorder %s106, 0
      %s109 = sadd.s32 %s108, 1
      %s110 = scalar_select %p107, %s108, %s109
      %p113 = pneg %p107
      %p114 = scmp.eq.s32.totalorder %s16, 1
      %p115 = por %p113, %p114
      %p116 = scmp.ne.s32.totalorder %s108, %s111
      %p117 = scmp.eq.s32.totalorder %s16, 0
      %p118 = por %p116, %p117
      %p119 = scmp.ne.s32.totalorder %s108, %s111
      %p120 = scmp.eq.s32.totalorder %s21, 1
      %p121 = por %p119, %p120
      %p122 = scmp.ne.s32.totalorder %s111, %s112
      %p123 = scmp.eq.s32.totalorder %s21, 0
      %p124 = por %p122, %p123
      %p125 = scmp.ne.s32.totalorder %s111, %s112
      %p126 = scmp.eq.s32.totalorder %s22, 1
      %p127 = por %p125, %p126
      %p129 = scmp.ne.s32.totalorder %s112, %s128
      %p130 = scmp.eq.s32.totalorder %s22, 0
      %p131 = por %p129, %p130
      %p132 = scmp.le.s32.totalorder 1, %s16
      %p133 = scmp.lt.s32.totalorder %s16, 3
      %p134 = pnand %p132, %p133
      %p135 = pneg %p134
      // Predicated region
      $region9: #{tpu_custom_call.1} parent=5 // pred_check
        _
      $region10: #{tpu_custom_call.1} parent=5 // pred_check_branch
        %137 = sbr.rel (%p134) target = $region12
      $region11: #{tpu_custom_call.1} parent=5 // pred_region
        %s138 = ssub.s32 %s16, 1
        // Predicated region
        $region13: #{tpu_custom_call.1} parent=11 // pred_check
          %p139 = pneg %p77
        $region14: #{tpu_custom_call.1} parent=11 // pred_check_branch
          %141 = sbr.rel (%p139) target = $region16
        $region15: #{tpu_custom_call.1} parent=11 // pred_region
          %s143 = ssub.s32 128, 128
          %144 = vsyncadd [#allocation8], %s143
          %s146 = sshll.u32 [#allocation7], 4
          %s147 = int_to_ptr.vmem [resolvable:$true] %s146
          %149 = dma.hbm_to_vmem [thread:$0]  %s1, 128, %s147, [#allocation8]
        $region16: #{tpu_custom_call.1} parent=11 // pred_fallthru
          _
        // Predicated region
        $region17: #{tpu_custom_call.1} parent=11 // pred_check
          %p150 = pneg %p98
        $region18: #{tpu_custom_call.1} parent=11 // pred_check_branch
          %152 = sbr.rel (%p150) target = $region20
        $region19: #{tpu_custom_call.1} parent=11 // pred_region
          %s154 = ssub.s32 128, 128
          %155 = vsyncadd [#allocation8], %s154
          %s157 = sshll.u32 [#allocation9], 4
          %s158 = int_to_ptr.vmem [resolvable:$true] %s157
          %160 = dma.hbm_to_vmem [thread:$0]  %s2, 128, %s158, [#allocation8]
        $region20: #{tpu_custom_call.1} parent=11 // pred_fallthru
          _
      $region12: #{tpu_custom_call.1} parent=5 // pred_fallthru
        _
      %p161 = scmp.lt.s32.totalorder %s16, 2
      // Predicated region
      $region21: #{tpu_custom_call.1} parent=5 // pred_check
        %p162 = pneg %p161
      $region22: #{tpu_custom_call.1} parent=5 // pred_check_branch
        %164 = sbr.rel (%p162) target = $region24
      $region23: #{tpu_custom_call.1} parent=5 // pred_region
        // Predicated region
        $region25: #{tpu_custom_call.1} parent=23 // pred_check
          %p165 = pneg %p50
        $region26: #{tpu_custom_call.1} parent=23 // pred_check_branch
          %167 = sbr.rel (%p165) target = $region28
        $region27: #{tpu_custom_call.1} parent=23 // pred_region
          %s168 = sand.u32 %s40, 1
          %s169 = scalar_lea.sflag [#allocation5], %s168
          %s170 = sand.u32 %s40, 1
          %s171 = smul.addr %s170, 256
          %s172 = scalar_lea.vmem [#allocation4], %s171
          %s173 = smul.u32 32, %s24
          %s175 = ssub.s32 4096, 4096
          %176 = vsyncadd %s169, %s175
          %s177 = smul.addr %s23, 32
          %s178 = sadd.s32 %s173, %s177
          %s179 = smul.addr %s178, 128
          %s180 = scalar_lea.hbm %s0, %s179
          %s181 = sshll.u32 %s172, 4
          %s182 = int_to_ptr.vmem [resolvable:$true] %s181
          %187 = dma.hbm_to_vmem [thread:$0]  %s180, 4096, %s182, %s169, 128, 128, 8
        $region28: #{tpu_custom_call.1} parent=23 // pred_fallthru
          _
      $region24: #{tpu_custom_call.1} parent=5 // pred_fallthru
        _
      %p188 = scmp.le.s32.totalorder 1, %s16
      %p189 = scmp.lt.s32.totalorder %s16, 3
      %p190 = pnand %p188, %p189
      %p191 = pneg %p190
      // Predicated region
      $region29: #{tpu_custom_call.1} parent=5 // pred_check
        _
      $region30: #{tpu_custom_call.1} parent=5 // pred_check_branch
        %193 = sbr.rel (%p190) target = $region32
      $region31: #{tpu_custom_call.1} parent=5 // pred_region
        %s194 = ssub.s32 %s16, 1
        %s195 = sand.u32 %s43, 1
        %s196 = scalar_lea.sflag [#allocation5], %s195
        %s197 = sand.u32 %s43, 1
        %s198 = smul.addr %s197, 256
        %s199 = scalar_lea.vmem [#allocation4], %s198
        // Predicated region
        $region33: #{tpu_custom_call.1} parent=31 // pred_check
          %p200 = pneg %p56
        $region34: #{tpu_custom_call.1} parent=31 // pred_check_branch
          %202 = sbr.rel (%p200) target = $region36
        $region35: #{tpu_custom_call.1} parent=31 // pred_region
          %203 = dma.done %s196, 4096
        $region36: #{tpu_custom_call.1} parent=31 // pred_fallthru
          _
        // Predicated region
        $region37: #{tpu_custom_call.1} parent=31 // pred_check
          %p204 = pneg %p77
        $region38: #{tpu_custom_call.1} parent=31 // pred_check_branch
          %206 = sbr.rel (%p204) target = $region40
        $region39: #{tpu_custom_call.1} parent=31 // pred_region
          %207 = dma.done [#allocation8], 128
        $region40: #{tpu_custom_call.1} parent=31 // pred_fallthru
          _
        // Predicated region
        $region41: #{tpu_custom_call.1} parent=31 // pred_check
          %p208 = pneg %p98
        $region42: #{tpu_custom_call.1} parent=31 // pred_check_branch
          %210 = sbr.rel (%p208) target = $region44
        $region43: #{tpu_custom_call.1} parent=31 // pred_region
          %211 = dma.done [#allocation8], 128
        $region44: #{tpu_custom_call.1} parent=31 // pred_fallthru
          _
        %s212 = sand.u32 %s43, 1
        %s213 = scalar_lea.sflag [#allocation5], %s212
        %s214 = sand.u32 %s43, 1
        %s215 = smul.addr %s214, 256
        %s216 = scalar_lea.vmem [#allocation4], %s215
        %p217 = pneg %p56
        %p218 = pneg %p53
        %p219 = pneg %p77
        %p220 = pneg %p74
        %p221 = pneg %p98
        %p222 = pneg %p95
        %p223 = pneg %p124
        %p224 = pneg %p121
        %s225 = sand.u32 %s111, 1
        %s226 = scalar_lea.sflag [#allocation6], %s225
        %s227 = sand.u32 %s111, 1
        %s228 = smul.addr %s227, 8
        %s229 = scalar_lea.vmem [#allocation10], %s228
        %s230 = smul.u32 32, %s26
        %p231 = scmp.eq.s32.totalorder %s26, 0
        // Predicated region
        $region45: #{tpu_custom_call.1} parent=31 // pred_check
          %p232 = pneg %p231
        $region46: #{tpu_custom_call.1} parent=31 // pred_check_branch
          %234 = sbr.rel (%p232) target = $region48
        $region47: #{tpu_custom_call.1} parent=31 // pred_region
          %235 = vst [vmem:[#allocation2] sm:$0xff] 0.0
        $region48: #{tpu_custom_call.1} parent=31 // pred_fallthru
          _
        %v236 = vld [vmem:[%s199] sm:$0xff]
        %v237 = vld [vmem:[%s199 + $0x8] sm:$0xff]
        %v238 = vld [vmem:[%s199 + $0x10] sm:$0xff]
        %v239 = vld [vmem:[%s199 + $0x18] sm:$0xff]
        %v240 = vld [vmem:[%s199 + $0x20] sm:$0xff]
        %v241 = vld [vmem:[%s199 + $0x28] sm:$0xff]
        %v242 = vld [vmem:[%s199 + $0x30] sm:$0xff]
        %v243 = vld [vmem:[%s199 + $0x38] sm:$0xff]
        %v244 = vld [vmem:[%s199 + $0x40] sm:$0xff]
        %v245 = vld [vmem:[%s199 + $0x48] sm:$0xff]
        %v246 = vld [vmem:[%s199 + $0x50] sm:$0xff]
        %v247 = vld [vmem:[%s199 + $0x58] sm:$0xff]
        %v248 = vld [vmem:[%s199 + $0x60] sm:$0xff]
        %v249 = vld [vmem:[%s199 + $0x68] sm:$0xff]
        %v250 = vld [vmem:[%s199 + $0x70] sm:$0xff]
        %v251 = vld [vmem:[%s199 + $0x78] sm:$0xff]
        %v252 = vld [vmem:[%s199 + $0x80] sm:$0xff]
        %v253 = vld [vmem:[%s199 + $0x88] sm:$0xff]
        %v254 = vld [vmem:[%s199 + $0x90] sm:$0xff]
        %v255 = vld [vmem:[%s199 + $0x98] sm:$0xff]
        %v256 = vld [vmem:[%s199 + $0xa0] sm:$0xff]
        %v257 = vld [vmem:[%s199 + $0xa8] sm:$0xff]
        %v258 = vld [vmem:[%s199 + $0xb0] sm:$0xff]
        %v259 = vld [vmem:[%s199 + $0xb8] sm:$0xff]
        %v260 = vld [vmem:[%s199 + $0xc0] sm:$0xff]
        %v261 = vld [vmem:[%s199 + $0xc8] sm:$0xff]
        %v262 = vld [vmem:[%s199 + $0xd0] sm:$0xff]
        %v263 = vld [vmem:[%s199 + $0xd8] sm:$0xff]
        %v264 = vld [vmem:[%s199 + $0xe0] sm:$0xff]
        %v265 = vld [vmem:[%s199 + $0xe8] sm:$0xff]
        %v266 = vld [vmem:[%s199 + $0xf0] sm:$0xff]
        %v267 = vld [vmem:[%s199 + $0xf8] sm:$0xff]
        %v268 = vld [vmem:[#allocation7] sm:$0xff]
        %269 = vmatprep.subr.mxu0 0.0
        %270 = vmatpush1.xpose.msra.mxu0 %v236
        %271 = vmatprep.subr.mxu0 0.0
        %272 = vmatpush1.xpose.msra.mxu0 %v237
        %273 = vmatprep.subr.mxu0 0.0
        %274 = vmatpush1.xpose.msra.mxu0 %v238
        %275 = vmatprep.subr.mxu0 0.0
        %276 = vmatpush1.xpose.msra.mxu0 %v239
        %277 = vmatprep.subr.mxu0 0.0
        %278 = vmatpush1.xpose.msra.mxu0 %v240
        %279 = vmatprep.subr.mxu0 0.0
        %280 = vmatpush1.xpose.msra.mxu0 %v241
        %281 = vmatprep.subr.mxu0 0.0
        %282 = vmatpush1.xpose.msra.mxu0 %v242
        %283 = vmatprep.subr.mxu0 0.0
        %284 = vmatpush1.xpose.msra.mxu0 %v243
        %285 = vmatprep.subr.mxu0 0.0
        %286 = vmatpush1.xpose.msra.mxu0 %v244
        %287 = vmatprep.subr.mxu0 0.0
        %288 = vmatpush1.xpose.msra.mxu0 %v245
        %289 = vmatprep.subr.mxu0 0.0
        %290 = vmatpush1.xpose.msra.mxu0 %v246
        %291 = vmatprep.subr.mxu0 0.0
        %292 = vmatpush1.xpose.msra.mxu0 %v247
        %293 = vmatprep.subr.mxu0 0.0
        %294 = vmatpush1.xpose.msra.mxu0 %v248
        %295 = vmatprep.subr.mxu0 0.0
        %296 = vmatpush1.xpose.msra.mxu0 %v249
        %297 = vmatprep.subr.mxu0 0.0
        %298 = vmatpush1.xpose.msra.mxu0 %v250
        %299 = vmatprep.subr.mxu0 0.0
        %300 = vmatpush1.xpose.msra.mxu0 %v251
        %301 = vmatprep.subr.mxu0 0.0
        %302 = vmatpush1.xpose.msra.mxu0 %v252
        %303 = vmatprep.subr.mxu0 0.0
        %304 = vmatpush1.xpose.msra.mxu0 %v253
        %305 = vmatprep.subr.mxu0 0.0
        %306 = vmatpush1.xpose.msra.mxu0 %v254
        %307 = vmatprep.subr.mxu0 0.0
        %308 = vmatpush1.xpose.msra.mxu0 %v255
        %309 = vmatprep.subr.mxu0 0.0
        %310 = vmatpush1.xpose.msra.mxu0 %v256
        %311 = vmatprep.subr.mxu0 0.0
        %312 = vmatpush1.xpose.msra.mxu0 %v257
        %313 = vmatprep.subr.mxu0 0.0
        %314 = vmatpush1.xpose.msra.mxu0 %v258
        %315 = vmatprep.subr.mxu0 0.0
        %316 = vmatpush1.xpose.msra.mxu0 %v259
        %317 = vmatprep.subr.mxu0 0.0
        %318 = vmatpush1.xpose.msra.mxu0 %v260
        %319 = vmatprep.subr.mxu0 0.0
        %320 = vmatpush1.xpose.msra.mxu0 %v261
        %321 = vmatprep.subr.mxu0 0.0
        %322 = vmatpush1.xpose.msra.mxu0 %v262
        %323 = vmatprep.subr.mxu0 0.0
        %324 = vmatpush1.xpose.msra.mxu0 %v263
        %325 = vmatprep.subr.mxu0 0.0
        %326 = vmatpush1.xpose.msra.mxu0 %v264
        %327 = vmatprep.subr.mxu0 0.0
        %328 = vmatpush1.xpose.msra.mxu0 %v265
        %329 = vmatprep.subr.mxu0 0.0
        %330 = vmatpush1.xpose.msra.mxu0 %v266
        %331 = vmatprep.subr.mxu0 0.0
        %332 = vmatpush1.xpose.msra.mxu0 %v267
        %333 = vmatprep.mubr.f32.mxu0 0.0
        %334 = vmatmul.mubr.f32.gmra.mrb[0].mxu0 %v268
        %v335 = vpop.f32.mrb[0].mxu0
        %v336 = vadd.f32 0.0, %v335
        %v337 = vpop.f32.mrb[0].mxu0
        %v338 = vadd.f32 0.0, %v337
        %339 = vdwg.mxu0
        %v340 = vrot.slane %v336, 4
        %v341 = vmax.f32 %v336, %v340
        %v342 = vrot.slane %v341, 2
        %v343 = vmax.f32 %v341, %v342
        %v344 = vrot.slane %v343, 1
        %v345 = vmax.f32 %v343, %v344
        %v346 = vrot.slane %v338, 4
        %v347 = vmax.f32 %v338, %v346
        %v348 = vrot.slane %v347, 2
        %v349 = vmax.f32 %v347, %v348
        %v350 = vrot.slane %v349, 1
        %v351 = vmax.f32 %v349, %v350
        %v352 = vsub.f32 %v336, %v345
        %v353 = vsub.f32 %v338, %v351
        %v354 = vmul.f32 %v352, 1.442695
        %v355 = vpow.pop %v354
        %v356 = vmul.f32 %v353, 1.442695
        %v357 = vpow.pop %v356
        %v358 = vrot.slane %v355, 4
        %v359 = vadd.f32 %v355, %v358
        %v360 = vrot.slane %v359, 2
        %v361 = vadd.f32 %v359, %v360
        %v362 = vrot.slane %v361, 1
        %v363 = vadd.f32 %v361, %v362
        %v364 = vrot.slane %v357, 4
        %v365 = vadd.f32 %v357, %v364
        %v366 = vrot.slane %v365, 2
        %v367 = vadd.f32 %v365, %v366
        %v368 = vrot.slane %v367, 1
        %v369 = vadd.f32 %v367, %v368
        %v370 = vrcp.pop %v363
        %v371 = vmul.f32 %v355, %v370
        %v372 = vrcp.pop %v369
        %v373 = vmul.f32 %v357, %v372
        %v374 = vld [vmem:[#allocation2] sm:$0xff]
        %375 = vmatprep.subr.mxu0 0.0
        %376 = vmatpush1.msra.mxu0 %v236
        %377 = vmatprep.subr.mxu0 0.0
        %378 = vmatpush1.msra.mxu0 %v237
        %379 = vmatprep.subr.mxu0 0.0
        %380 = vmatpush1.msra.mxu0 %v238
        %381 = vmatprep.subr.mxu0 0.0
        %382 = vmatpush1.msra.mxu0 %v239
        %383 = vmatprep.subr.mxu0 0.0
        %384 = vmatpush1.msra.mxu0 %v240
        %385 = vmatprep.subr.mxu0 0.0
        %386 = vmatpush1.msra.mxu0 %v241
        %387 = vmatprep.subr.mxu0 0.0
        %388 = vmatpush1.msra.mxu0 %v242
        %389 = vmatprep.subr.mxu0 0.0
        %390 = vmatpush1.msra.mxu0 %v243
        %391 = vmatprep.subr.mxu0 0.0
        %392 = vmatpush1.msra.mxu0 %v244
        %393 = vmatprep.subr.mxu0 0.0
        %394 = vmatpush1.msra.mxu0 %v245
        %395 = vmatprep.subr.mxu0 0.0
        %396 = vmatpush1.msra.mxu0 %v246
        %397 = vmatprep.subr.mxu0 0.0
        %398 = vmatpush1.msra.mxu0 %v247
        %399 = vmatprep.subr.mxu0 0.0
        %400 = vmatpush1.msra.mxu0 %v248
        %401 = vmatprep.subr.mxu0 0.0
        %402 = vmatpush1.msra.mxu0 %v249
        %403 = vmatprep.subr.mxu0 0.0
        %404 = vmatpush1.msra.mxu0 %v250
        %405 = vmatprep.subr.mxu0 0.0
        %406 = vmatpush1.msra.mxu0 %v251
        %407 = vmatprep.subr.mxu0 0.0
        %408 = vmatpush1.msra.mxu0 %v252
        %409 = vmatprep.subr.mxu0 0.0
        %410 = vmatpush1.msra.mxu0 %v253
        %411 = vmatprep.subr.mxu0 0.0
        %412 = vmatpush1.msra.mxu0 %v254
        %413 = vmatprep.subr.mxu0 0.0
        %414 = vmatpush1.msra.mxu0 %v255
        %415 = vmatprep.subr.mxu0 0.0
        %416 = vmatpush1.msra.mxu0 %v256
        %417 = vmatprep.subr.mxu0 0.0
        %418 = vmatpush1.msra.mxu0 %v257
        %419 = vmatprep.subr.mxu0 0.0
        %420 = vmatpush1.msra.mxu0 %v258
        %421 = vmatprep.subr.mxu0 0.0
        %422 = vmatpush1.msra.mxu0 %v259
        %423 = vmatprep.subr.mxu0 0.0
        %424 = vmatpush1.msra.mxu0 %v260
        %425 = vmatprep.subr.mxu0 0.0
        %426 = vmatpush1.msra.mxu0 %v261
        %427 = vmatprep.subr.mxu0 0.0
        %428 = vmatpush1.msra.mxu0 %v262
        %429 = vmatprep.subr.mxu0 0.0
        %430 = vmatpush1.msra.mxu0 %v263
        %431 = vmatprep.subr.mxu0 0.0
        %432 = vmatpush1.msra.mxu0 %v264
        %433 = vmatprep.subr.mxu0 0.0
        %434 = vmatpush1.msra.mxu0 %v265
        %435 = vmatprep.subr.mxu0 0.0
        %436 = vmatpush1.msra.mxu0 %v266
        %437 = vmatprep.subr.mxu0 0.0
        %438 = vmatpush1.msra.mxu0 %v267
        %439 = vmatprep.mubr.f32.mxu0 %v373
        %440 = vmatmul.mubr.f32.gmra.mrb[0].mxu0 %v371
        %v441 = vpop.f32.mrb[0].mxu0
        %v442 = vadd.f32 0.0, %v441
        %v443 = vpop.f32.mrb[0].mxu0
        %444 = vdwg.mxu0
        %v445 = vadd.f32 %v374, %v442
        %446 = vst [vmem:[#allocation2] sm:$0xff] %v445
        // Predicated region
        $region49: #{tpu_custom_call.1} parent=31 // pred_check
          %p447 = pneg %p231
        $region50: #{tpu_custom_call.1} parent=31 // pred_check_branch
          %449 = sbr.rel (%p447) target = $region52
        $region51: #{tpu_custom_call.1} parent=31 // pred_region
          %v450 = vld [vmem:[#allocation9] sm:$0xff]
          %v451 = vld [vmem:[#allocation2] sm:$0xff]
          %453 = vset.pattern.permute.xlu0 32
          %454 = vperm.xlu0 %453, %v451
          %v455 = vpop.permute.xlu0 %454
          %v457 = vmul.f32 %v450, %v455
          %v458 = vsub.f32 %v451, %v457
          %v459 = vmul.f32 %v458, %v458
          %vm460 = vcmask 261120
          %v461 = vsel %vm460, %v459, 0.0
          %462 = vadd.xlane.f32.xlu0 %v461
          %v463 = vpop.xlane.xlu0 %462
          %v464 = vmax.f32 %v463, 1e-24
          %v465 = vrsqrt.pop %v464
          %v466 = vmul.f32 %v458, %v465
          %v467 = vmul.f32 %v466, %v466
          %v468 = vsel %vm460, %v467, 0.0
          %469 = vadd.xlane.f32.xlu0 %v468
          %v470 = vpop.xlane.xlu0 %469
          %v471 = vrot.slane %v470, 4
          %v472 = vadd.f32 %v470, %v471
          %v473 = vrot.slane %v472, 2
          %v474 = vadd.f32 %v472, %v473
          %v475 = vrot.slane %v474, 1
          %v476 = vadd.f32 %v474, %v475
          %s477 = vtos %v476
          %s478 = smax.f32 %s477, 1e-24
          %v479 = vstv %s478
          %v480 = vrsqrt.pop %v479
          %s481 = vtos %v480
          %v482 = vstv %s481
          %v483 = vmul.f32 %v466, %v482
          %484 = vst.msk [vmem:[%s229] sm:$0xff] %vm460, %v483
        $region52: #{tpu_custom_call.1} parent=31 // pred_fallthru
          _
        %s485 = sand.u32 %s111, 1
        %s486 = scalar_lea.sflag [#allocation6], %s485
        %s487 = sand.u32 %s111, 1
        %s488 = smul.addr %s487, 8
        %s489 = scalar_lea.vmem [#allocation10], %s488
        // Predicated region
        $region53: #{tpu_custom_call.1} parent=31 // pred_check
          %p490 = pneg %p121
        $region54: #{tpu_custom_call.1} parent=31 // pred_check_branch
          %492 = sbr.rel (%p490) target = $region56
        $region55: #{tpu_custom_call.1} parent=31 // pred_region
          %s494 = ssub.s32 128, 128
          %495 = vsyncadd %s486, %s494
          %s496 = smul.addr %s25, 128
          %s497 = scalar_lea.hbm %s3, %s496
          %s499 = sshll.u32 %s489, 4
          %s500 = int_to_ptr.vmem [resolvable:$true] %s499
          %502 = dma.vmem_to_hbm [thread:$0]  %s500, 128, %s497, %s486
        $region56: #{tpu_custom_call.1} parent=31 // pred_fallthru
          _
      $region32: #{tpu_custom_call.1} parent=5 // pred_fallthru
        _
      %p503 = scmp.le.s32.totalorder 2, %s16
      // Predicated region
      $region57: #{tpu_custom_call.1} parent=5 // pred_check
        %p504 = pneg %p503
      $region58: #{tpu_custom_call.1} parent=5 // pred_check_branch
        %506 = sbr.rel (%p504) target = $region60
      $region59: #{tpu_custom_call.1} parent=5 // pred_region
        %s507 = ssub.s32 %s16, 2
        // Predicated region
        $region61: #{tpu_custom_call.1} parent=59 // pred_check
          %p508 = pneg %p127
        $region62: #{tpu_custom_call.1} parent=59 // pred_check_branch
          %510 = sbr.rel (%p508) target = $region64
        $region63: #{tpu_custom_call.1} parent=59 // pred_region
          %s511 = sand.u32 %s112, 1
          %s512 = scalar_lea.sflag [#allocation6], %s511
          %s513 = sand.u32 %s112, 1
          %s514 = smul.addr %s513, 8
          %s515 = scalar_lea.vmem [#allocation10], %s514
          %516 = dma.done %s512, 128
        $region64: #{tpu_custom_call.1} parent=59 // pred_fallthru
          _
      $region60: #{tpu_custom_call.1} parent=5 // pred_fallthru
        _
    $region6: #{tpu_custom_call.1} parent=1 // loop_footer
      %s20 = sadd.s32 1, %s16
    $region7: #{tpu_custom_call.1} parent=1 // loop_footer_branch
      %15 = sbr.rel target = $region3
    $region8: #{tpu_custom_call.1} parent=1 // loop_exit
      _
    %517 = vsyncpa [#allocation5], 1
    %s518 = scalar_lea.sflag [#allocation5], 1
    %519 = vsyncpa %s518, 1
    %520 = vsyncpa [#allocation8], 1
    %521 = vsyncpa [#allocation6], 1
    %s522 = scalar_lea.sflag [#allocation6], 1
    %523 = vsyncpa %s522, 1

</llo_original>
